<compile_context>
chip_gen: v7x
topology: tpu7x:2x2x1
jax: 0.10.0
libtpu: 0.0.40
codegen_flags: <defaults>
</compile_context>

<pallas_src>
import functools

import jax
import jax.numpy as jnp
from jax.experimental import pallas as pl
from jax.experimental.pallas import tpu as pltpu

_SUBLANE = 8  # sublane width (second-to-last-dim tiling unit)


def _round_up(n, m):
    return ((n + m - 1) // m) * m


def splitnn_kernel(x_ref, w1_ref, b1_ref, w2_ref, b2_ref, out_ref):
    """Fused image_client (Linear+ReLU) -> label_client (Linear+LogSoftmax)."""
    # ---- image_client: Linear + ReLU ----
    # x arrives in its HBM dtype; cast to the matmul dtype in VMEM (no wrapper
    # HBM pass).  MXU matmul with f32 accumulation; bias/ReLU in f32 on the VPU.
    x = x_ref[...].astype(w1_ref.dtype)
    h = jnp.dot(x, w1_ref[...], preferred_element_type=jnp.float32)
    h = jnp.maximum(h + b1_ref[...], 0.0)

    # ---- label_client: Linear + LogSoftmax ----
    logits = jnp.dot(h.astype(w2_ref.dtype), w2_ref[...],
                     preferred_element_type=jnp.float32)
    logits = logits + b2_ref[...]

    # Numerically stable log_softmax over the (narrow) class axis.  Row-wise
    # only: garbage rows of a partial last batch block stay in their own rows
    # and are never stored (Pallas clips the partial output block).
    m = jnp.max(logits, axis=-1, keepdims=True)
    shifted = logits - m
    lse = jnp.log(jnp.sum(jnp.exp(shifted), axis=-1, keepdims=True))
    out_ref[...] = (shifted - lse).astype(out_ref.dtype)


def prepare_params(w1, b1, w2, b2, *, matmul_dtype=jnp.bfloat16):
    """One-time weight preparation (hoisted out of the per-call forward).

    Casts the matmul weights to `matmul_dtype` and the biases to f32 so the
    forward pass does not re-read / re-write the weight matrices in HBM on
    every call.
    """
    return (w1.astype(matmul_dtype), b1.astype(jnp.float32),
            w2.astype(matmul_dtype), b2.astype(jnp.float32))


@functools.partial(jax.jit, static_argnames=("block_batch", "out_dtype"))
def splitnn_forward(x, w1, b1, w2, b2, *, block_batch=1024,
                    out_dtype=jnp.float32):
    batch, in_features = x.shape
    hidden = w1.shape[1]
    num_classes = w2.shape[1]

    # ---- batch tiling: tile rows; weights stay resident across the grid ----
    tb = _round_up(min(block_batch, batch), _SUBLANE)
    if batch > _SUBLANE:
        # Keep >= 2 grid steps so v7x megacore can split the "parallel" axis.
        tb = min(tb, _round_up(pl.cdiv(batch, 2), _SUBLANE))
    grid = (pl.cdiv(batch, tb),)   # partial last block is masked by Pallas

    out_itemsize = jnp.dtype(out_dtype).itemsize
    cost = pl.CostEstimate(
        flops=2 * batch * in_features * hidden
              + 2 * batch * hidden * num_classes,
        transcendentals=batch * (num_classes + 1),       # exp per class + log per row
        bytes_accessed=(x.size * x.dtype.itemsize
                        + w1.size * w1.dtype.itemsize + b1.size * 4
                        + w2.size * w2.dtype.itemsize + b2.size * 4
                        + batch * num_classes * out_itemsize),
    )

    return pl.pallas_call(
        splitnn_kernel,
        out_shape=jax.ShapeDtypeStruct((batch, num_classes), out_dtype),
        grid=grid,
        in_specs=[
            pl.BlockSpec((tb, in_features), lambda i: (i, 0)),         # x tile
            pl.BlockSpec((in_features, hidden), lambda i: (0, 0)),     # w1 resident
            pl.BlockSpec((1, hidden), lambda i: (0, 0)),               # b1 resident
            pl.BlockSpec((hidden, num_classes), lambda i: (0, 0)),     # w2 resident
            pl.BlockSpec((1, num_classes), lambda i: (0, 0)),          # b2 resident
        ],
        out_specs=pl.BlockSpec((tb, num_classes), lambda i: (i, 0)),
        compiler_params=pltpu.CompilerParams(
            # batch axis is embarrassingly parallel -> v7x megacore sharding
            dimension_semantics=("parallel",),
            # explicit scoped-VMEM budget: plenty for tb=1024 tiles + resident
            # weights, above v5e's 16 MiB default, within v7x's 64 MiB physical
            vmem_limit_bytes=32 * 1024 * 1024),
        cost_estimate=cost,
    )(x, w1, b1, w2, b2)


def reference_forward(x, w1, b1, w2, b2, matmul_dtype=jnp.float32):
    f32 = jnp.float32
    xq = x.astype(matmul_dtype).astype(f32)
    w1q = w1.astype(matmul_dtype).astype(f32)
    h = jnp.maximum(xq @ w1q + b1, 0.0)
    w2q = w2.astype(matmul_dtype).astype(f32)
    logits = h.astype(matmul_dtype).astype(f32) @ w2q + b2
    return jax.nn.log_softmax(logits, axis=-1)


if __name__ == "__main__":
    # Small, module-consistent shapes. batch deliberately not a multiple of 8
    # and num_classes < 128 so the partial-block / narrow-output paths are
    # exercised.
    batch = 10
    in_features = 64     # flattened "image" features fed to image_client
    hidden = 128         # image_client output / split ("cut layer") width
    num_classes = 16     # label_client output width

    key = jax.random.PRNGKey(0)
    kx, k1, kb1, k2, kb2 = jax.random.split(key, 5)

    x = jax.random.normal(kx, (batch, in_features), jnp.float32)
    w1 = jax.random.normal(k1, (in_features, hidden), jnp.float32) * (1.0 / in_features) ** 0.5
    b1 = jax.random.normal(kb1, (1, hidden), jnp.float32) * 0.01
    w2 = jax.random.normal(k2, (hidden, num_classes), jnp.float32) * (1.0 / hidden) ** 0.5
    b2 = jax.random.normal(kb2, (1, num_classes), jnp.float32) * 0.01

    # 1) exact-semantics check: f32 matmul operands vs f32 reference
    p_f32 = prepare_params(w1, b1, w2, b2, matmul_dtype=jnp.float32)
    out_f32 = jax.block_until_ready(splitnn_forward(x, *p_f32))
    ref_f32 = reference_forward(x, w1, b1, w2, b2, matmul_dtype=jnp.float32)
    assert out_f32.shape == (batch, num_classes)
    assert jnp.allclose(out_f32, ref_f32, atol=1e-5, rtol=1e-5), "f32 mismatch vs reference"

    # 2) perf path: bf16 matmul operands (f32 accumulate / elementwise) vs a
    #    reference using the same bf16-quantized operands.
    p_bf16 = prepare_params(w1, b1, w2, b2, matmul_dtype=jnp.bfloat16)
    out_bf16 = jax.block_until_ready(splitnn_forward(x, *p_bf16))
    ref_bf16 = reference_forward(x, w1, b1, w2, b2, matmul_dtype=jnp.bfloat16)
    assert out_bf16.shape == (batch, num_classes)
    assert jnp.allclose(out_bf16, ref_bf16, atol=5e-3, rtol=5e-3), "bf16 mismatch vs reference"

    # 3) optional bf16 output stream (halves output HBM bytes); loose tolerance
    #    since bf16 log-probs keep ~3 decimal digits.
    out_bf16_o = jax.block_until_ready(
        splitnn_forward(x, *p_bf16, out_dtype=jnp.bfloat16))
    assert out_bf16_o.dtype == jnp.bfloat16
    assert jnp.allclose(out_bf16_o.astype(jnp.float32), ref_bf16,
                        atol=5e-2, rtol=5e-2), "bf16-output mismatch vs reference"

    print("KERNEL_OK")
</pallas_src>

<mosaic_0001>
module attributes {stable_mosaic.version = 11 : i64} {
  func.func @splitnn_kernel(%arg0: i32, %arg1: memref<8x64xf32, #tpu.memory_space<vmem>>, %arg2: memref<64x128xf32, #tpu.memory_space<vmem>>, %arg3: memref<1x128xf32, #tpu.memory_space<vmem>>, %arg4: memref<128x16xf32, #tpu.memory_space<vmem>>, %arg5: memref<1x16xf32, #tpu.memory_space<vmem>>, %arg6: memref<8x16xf32, #tpu.memory_space<vmem>>) attributes {dimension_semantics = [#tpu.dimension_semantics<parallel>], iteration_bounds = array<i64: 2>, scalar_prefetch = 0 : i64, scratch_operands = 0 : i64, tpu.core_type = #tpu.core_type<tc>, window_params = [{transform_indices = @transform_0, window_bounds = array<i64: 8, 64>}, {pipeline_mode = #tpu.pipeline_mode<synchronous>, transform_indices = @transform_1, window_bounds = array<i64: 64, 128>}, {pipeline_mode = #tpu.pipeline_mode<synchronous>, transform_indices = @transform_2, window_bounds = array<i64: 1, 128>}, {pipeline_mode = #tpu.pipeline_mode<synchronous>, transform_indices = @transform_3, window_bounds = array<i64: 128, 16>}, {pipeline_mode = #tpu.pipeline_mode<synchronous>, transform_indices = @transform_4, window_bounds = array<i64: 1, 16>}, {transform_indices = @transform_5, window_bounds = array<i64: 8, 16>}]} {
    %c0 = arith.constant 0 : index
    %c0_0 = arith.constant 0 : index
    %0 = vector.load %arg1[%c0, %c0_0] : memref<8x64xf32, #tpu.memory_space<vmem>>, vector<8x64xf32>
    %c0_1 = arith.constant 0 : index
    %c0_2 = arith.constant 0 : index
    %1 = vector.load %arg2[%c0_1, %c0_2] : memref<64x128xf32, #tpu.memory_space<vmem>>, vector<64x128xf32>
    %cst = arith.constant dense<0.000000e+00> : vector<8x128xf32>
    %2 = tpu.matmul %0, %1, %cst {dimension_numbers = #tpu.dot_dimension_numbers<[1], [0], [0], [1], [0, 0, 1, 1], [], []>} : vector<8x64xf32>, vector<64x128xf32>, vector<8x128xf32> -> vector<8x128xf32>
    %c0_3 = arith.constant 0 : index
    %c0_4 = arith.constant 0 : index
    %3 = vector.load %arg3[%c0_3, %c0_4] : memref<1x128xf32, #tpu.memory_space<vmem>>, vector<1x128xf32>
    %4 = vector.broadcast %3 : vector<1x128xf32> to vector<8x128xf32>
    %5 = arith.addf %2, %4 : vector<8x128xf32>
    %cst_5 = arith.constant 0.000000e+00 : f32
    %6 = vector.broadcast %cst_5 : f32 to vector<8x128xf32>
    %7 = arith.maximumf %5, %6 : vector<8x128xf32>
    %c0_6 = arith.constant 0 : index
    %c0_7 = arith.constant 0 : index
    %8 = vector.load %arg4[%c0_6, %c0_7] : memref<128x16xf32, #tpu.memory_space<vmem>>, vector<128x16xf32>
    %cst_8 = arith.constant dense<0.000000e+00> : vector<8x16xf32>
    %9 = tpu.matmul %7, %8, %cst_8 {dimension_numbers = #tpu.dot_dimension_numbers<[1], [0], [0], [1], [0, 0, 1, 1], [], []>} : vector<8x128xf32>, vector<128x16xf32>, vector<8x16xf32> -> vector<8x16xf32>
    %c0_9 = arith.constant 0 : index
    %c0_10 = arith.constant 0 : index
    %10 = vector.load %arg5[%c0_9, %c0_10] : memref<1x16xf32, #tpu.memory_space<vmem>>, vector<1x16xf32>
    %11 = vector.broadcast %10 : vector<1x16xf32> to vector<8x16xf32>
    %12 = arith.addf %9, %11 : vector<8x16xf32>
    %cst_11 = arith.constant dense<0xFF800000> : vector<8xf32>
    %13 = vector.multi_reduction <maximumf>, %12, %cst_11 [1] : vector<8x16xf32> to vector<8xf32>
    %14 = vector.shape_cast %13 : vector<8xf32> to vector<8x1xf32>
    %15 = vector.broadcast %14 : vector<8x1xf32> to vector<8x16xf32>
    %16 = arith.subf %12, %15 : vector<8x16xf32>
    %17 = math.exp %16 : vector<8x16xf32>
    %cst_12 = arith.constant dense<0.000000e+00> : vector<8xf32>
    %18 = vector.multi_reduction <add>, %17, %cst_12 [1] : vector<8x16xf32> to vector<8xf32>
    %19 = vector.shape_cast %18 : vector<8xf32> to vector<8x1xf32>
    %20 = math.log %19 : vector<8x1xf32>
    %21 = vector.broadcast %20 : vector<8x1xf32> to vector<8x16xf32>
    %22 = arith.subf %16, %21 : vector<8x16xf32>
    %c0_13 = arith.constant 0 : index
    %c0_14 = arith.constant 0 : index
    %23 = vector.load %arg6[%c0_13, %c0_14] : memref<8x16xf32, #tpu.memory_space<vmem>>, vector<8x16xf32>
    tpu.vector_store %arg6[%c0_13, %c0_14], %22 {strides = array<i32>} : memref<8x16xf32, #tpu.memory_space<vmem>>, vector<8x16xf32>,
    return
  }
  func.func @transform_0(%arg0: i32) -> (i32, i32) {
    %c0_i32 = arith.constant 0 : i32
    %c0_i32_0 = arith.constant 0 : i32
    return %arg0, %c0_i32 : i32, i32
  }
  func.func @transform_1(%arg0: i32) -> (i32, i32) {
    %c0_i32 = arith.constant 0 : i32
    %c0_i32_0 = arith.constant 0 : i32
    %c0_i32_1 = arith.constant 0 : i32
    return %c0_i32, %c0_i32_0 : i32, i32
  }
  func.func @transform_2(%arg0: i32) -> (i32, i32) {
    %c0_i32 = arith.constant 0 : i32
    %c0_i32_0 = arith.constant 0 : i32
    %c0_i32_1 = arith.constant 0 : i32
    return %c0_i32, %c0_i32_0 : i32, i32
  }
  func.func @transform_3(%arg0: i32) -> (i32, i32) {
    %c0_i32 = arith.constant 0 : i32
    %c0_i32_0 = arith.constant 0 : i32
    %c0_i32_1 = arith.constant 0 : i32
    return %c0_i32, %c0_i32_0 : i32, i32
  }
  func.func @transform_4(%arg0: i32) -> (i32, i32) {
    %c0_i32 = arith.constant 0 : i32
    %c0_i32_0 = arith.constant 0 : i32
    %c0_i32_1 = arith.constant 0 : i32
    return %c0_i32, %c0_i32_0 : i32, i32
  }
  func.func @transform_5(%arg0: i32) -> (i32, i32) {
    %c0_i32 = arith.constant 0 : i32
    %c0_i32_0 = arith.constant 0 : i32
    return %arg0, %c0_i32 : i32, i32
  }
}

</mosaic_0001>

<llo_original>
// kernel: splitnn_forward.1
$region0: #{splitnn_forward.1}
  #allocation0 [shape = 'u32[]', space=smem, size = 0x4, offset = 0x4, fixed_abs, tag = 'smem constant byte address 0x4 - core index']
  #allocation1 [shape = 'u32[144,128]{1,0:T(1,128)}', space=vmem, size = 0x12000, scoped, tag = 'internal scratch']
  %s0 = inlined_call_operand.vmem [shape: f32[10,64], index: 0, kind: input, shape index: {}]
  %s1 = inlined_call_operand.vmem [shape: f32[64,128], index: 1, kind: input, shape index: {}]
  %s2 = inlined_call_operand.vmem [shape: f32[1,128], index: 2, kind: input, shape index: {}]
  %s3 = inlined_call_operand.vmem [shape: f32[128,16], index: 3, kind: input, shape index: {}]
  %s4 = inlined_call_operand.vmem [shape: f32[1,16], index: 4, kind: input, shape index: {}]
  %s5 = inlined_call_operand.hbm [shape: f32[10,16], index: 5, kind: output, shape index: {}]
  %s6 = sld [smem:[#allocation0]]
  $region53: #{splitnn_forward.1} parent=0
    _
  %s8 = ssub.s32 1, %s6
  %s9 = scalar_select 0, %s8, %s6
  $region1: #{splitnn_forward.1} parent=0
    #allocation2 [shape = 'u8[8192]{0}', space=vmem, size = 0x2000, scoped, tag = 'output window, operand 0']
    #allocation3 [shape = 's32[2]{0}', space=sflag, size = 0x8, scoped, tag = 'scoped memory for splitnn_forward.1']
    %10 = vsyncpa [#allocation3], 0
    %s11 = scalar_lea.sflag [#allocation3], 1
    %12 = vsyncpa %s11, 0
    loop: start=0, step=1, limit=4
    $region2: #{splitnn_forward.1} parent=1 // loop_pre_header
      _
    $region3: #{splitnn_forward.1} parent=1 // loop_header
      %s14 = sphi 0, %s18
      %p15 = scmp.ge.s32.totalorder %s14, 4
      %s24 = sphi 0, %s26
      %s27 = sphi 0, %s24
      %s28 = sphi 0, %s27
      %s44 = sphi 0, %s28
      %s48 = sphi 0, %s48
      %s50 = sphi 0, %s48
      %s51 = sphi 0, %s50
      %s65 = sphi 0, %s51
      %s69 = sphi 0, %s69
      %s71 = sphi 0, %s69
      %s72 = sphi 0, %s71
      %s86 = sphi 0, %s72
      %s90 = sphi 0, %s90
      %s92 = sphi 0, %s90
      %s93 = sphi 0, %s92
      %s107 = sphi 0, %s93
      %s111 = sphi 0, %s111
      %s113 = sphi 0, %s111
      %s114 = sphi 0, %s113
      %s128 = sphi 0, %s114
      %s134 = sphi 0, %s136
      %s137 = sphi 0, %s134
      %s138 = sphi 0, %s137
      %s154 = sphi 0, %s138
    $region4: #{splitnn_forward.1} parent=1 // loop_header_branch
      %17 = sbr.rel (%p15) target = $region8
    $region5: #{splitnn_forward.1} parent=1 // loop_body
      %s19 = ssub.s32 %s14, 1
      %s20 = ssub.s32 %s14, 2
      %s21 = sadd.s32 %s14, 1
      %s22 = ssub.s32 %s14, %s21
      %p23 = scmp.eq.s32.totalorder %s22, 0
      %s25 = sadd.s32 %s24, 1
      %s26 = scalar_select %p23, %s24, %s25
      %p29 = pneg %p23
      %p30 = scmp.eq.s32.totalorder %s14, 1
      %p31 = por %p29, %p30
      %p32 = scmp.ne.s32.totalorder %s24, %s27
      %p33 = scmp.eq.s32.totalorder %s14, 0
      %p34 = por %p32, %p33
      %p35 = scmp.ne.s32.totalorder %s24, %s27
      %p36 = scmp.eq.s32.totalorder %s19, 1
      %p37 = por %p35, %p36
      %p38 = scmp.ne.s32.totalorder %s27, %s28
      %p39 = scmp.eq.s32.totalorder %s19, 0
      %p40 = por %p38, %p39
      %p41 = scmp.ne.s32.totalorder %s27, %s28
      %p42 = scmp.eq.s32.totalorder %s20, 1
      %p43 = por %p41, %p42
      %p45 = scmp.ne.s32.totalorder %s28, %s44
      %p46 = scmp.eq.s32.totalorder %s20, 0
      %p47 = por %p45, %p46
      %s49 = sadd.s32 %s48, 1
      %p52 = scmp.eq.s32.totalorder %s14, 1
      %p53 = scmp.ne.s32.totalorder %s48, %s50
      %p54 = scmp.eq.s32.totalorder %s14, 0
      %p55 = por %p53, %p54
      %p56 = scmp.ne.s32.totalorder %s48, %s50
      %p57 = scmp.eq.s32.totalorder %s19, 1
      %p58 = por %p56, %p57
      %p59 = scmp.ne.s32.totalorder %s50, %s51
      %p60 = scmp.eq.s32.totalorder %s19, 0
      %p61 = por %p59, %p60
      %p62 = scmp.ne.s32.totalorder %s50, %s51
      %p63 = scmp.eq.s32.totalorder %s20, 1
      %p64 = por %p62, %p63
      %p66 = scmp.ne.s32.totalorder %s51, %s65
      %p67 = scmp.eq.s32.totalorder %s20, 0
      %p68 = por %p66, %p67
      %s70 = sadd.s32 %s69, 1
      %p73 = scmp.eq.s32.totalorder %s14, 1
      %p74 = scmp.ne.s32.totalorder %s69, %s71
      %p75 = scmp.eq.s32.totalorder %s14, 0
      %p76 = por %p74, %p75
      %p77 = scmp.ne.s32.totalorder %s69, %s71
      %p78 = scmp.eq.s32.totalorder %s19, 1
      %p79 = por %p77, %p78
      %p80 = scmp.ne.s32.totalorder %s71, %s72
      %p81 = scmp.eq.s32.totalorder %s19, 0
      %p82 = por %p80, %p81
      %p83 = scmp.ne.s32.totalorder %s71, %s72
      %p84 = scmp.eq.s32.totalorder %s20, 1
      %p85 = por %p83, %p84
      %p87 = scmp.ne.s32.totalorder %s72, %s86
      %p88 = scmp.eq.s32.totalorder %s20, 0
      %p89 = por %p87, %p88
      %s91 = sadd.s32 %s90, 1
      %p94 = scmp.eq.s32.totalorder %s14, 1
      %p95 = scmp.ne.s32.totalorder %s90, %s92
      %p96 = scmp.eq.s32.totalorder %s14, 0
      %p97 = por %p95, %p96
      %p98 = scmp.ne.s32.totalorder %s90, %s92
      %p99 = scmp.eq.s32.totalorder %s19, 1
      %p100 = por %p98, %p99
      %p101 = scmp.ne.s32.totalorder %s92, %s93
      %p102 = scmp.eq.s32.totalorder %s19, 0
      %p103 = por %p101, %p102
      %p104 = scmp.ne.s32.totalorder %s92, %s93
      %p105 = scmp.eq.s32.totalorder %s20, 1
      %p106 = por %p104, %p105
      %p108 = scmp.ne.s32.totalorder %s93, %s107
      %p109 = scmp.eq.s32.totalorder %s20, 0
      %p110 = por %p108, %p109
      %s112 = sadd.s32 %s111, 1
      %p115 = scmp.eq.s32.totalorder %s14, 1
      %p116 = scmp.ne.s32.totalorder %s111, %s113
      %p117 = scmp.eq.s32.totalorder %s14, 0
      %p118 = por %p116, %p117
      %p119 = scmp.ne.s32.totalorder %s111, %s113
      %p120 = scmp.eq.s32.totalorder %s19, 1
      %p121 = por %p119, %p120
      %p122 = scmp.ne.s32.totalorder %s113, %s114
      %p123 = scmp.eq.s32.totalorder %s19, 0
      %p124 = por %p122, %p123
      %p125 = scmp.ne.s32.totalorder %s113, %s114
      %p126 = scmp.eq.s32.totalorder %s20, 1
      %p127 = por %p125, %p126
      %p129 = scmp.ne.s32.totalorder %s114, %s128
      %p130 = scmp.eq.s32.totalorder %s20, 0
      %p131 = por %p129, %p130
      %s132 = ssub.s32 %s14, %s21
      %p133 = scmp.eq.s32.totalorder %s132, 0
      %s135 = sadd.s32 %s134, 1
      %s136 = scalar_select %p133, %s134, %s135
      %p139 = pneg %p133
      %p140 = scmp.eq.s32.totalorder %s14, 1
      %p141 = por %p139, %p140
      %p142 = scmp.ne.s32.totalorder %s134, %s137
      %p143 = scmp.eq.s32.totalorder %s14, 0
      %p144 = por %p142, %p143
      %p145 = scmp.ne.s32.totalorder %s134, %s137
      %p146 = scmp.eq.s32.totalorder %s19, 1
      %p147 = por %p145, %p146
      %p148 = scmp.ne.s32.totalorder %s137, %s138
      %p149 = scmp.eq.s32.totalorder %s19, 0
      %p150 = por %p148, %p149
      %p151 = scmp.ne.s32.totalorder %s137, %s138
      %p152 = scmp.eq.s32.totalorder %s20, 1
      %p153 = por %p151, %p152
      %p155 = scmp.ne.s32.totalorder %s138, %s154
      %p156 = scmp.eq.s32.totalorder %s20, 0
      %p157 = por %p155, %p156
      %p158 = scmp.le.s32.totalorder 1, %s14
      %p159 = scmp.lt.s32.totalorder %s14, 3
      %p160 = pnand %p158, %p159
      %p161 = pneg %p160
      // Predicated region
      $region9: #{splitnn_forward.1} parent=5 // pred_check
        _
      $region10: #{splitnn_forward.1} parent=5 // pred_check_branch
        %163 = sbr.rel (%p160) target = $region12
      $region11: #{splitnn_forward.1} parent=5 // pred_region
        %s164 = ssub.s32 %s14, 1
        // Predicated region
        $region13: #{splitnn_forward.1} parent=11 // pred_check
          %p165 = pneg %p61
        $region14: #{splitnn_forward.1} parent=11 // pred_check_branch
          %167 = sbr.rel (%p165) target = $region16
        $region15: #{splitnn_forward.1} parent=11 // pred_region
          _
        $region16: #{splitnn_forward.1} parent=11 // pred_fallthru
          _
        // Predicated region
        $region17: #{splitnn_forward.1} parent=11 // pred_check
          %p168 = pneg %p82
        $region18: #{splitnn_forward.1} parent=11 // pred_check_branch
          %170 = sbr.rel (%p168) target = $region20
        $region19: #{splitnn_forward.1} parent=11 // pred_region
          _
        $region20: #{splitnn_forward.1} parent=11 // pred_fallthru
          _
        // Predicated region
        $region21: #{splitnn_forward.1} parent=11 // pred_check
          %p171 = pneg %p103
        $region22: #{splitnn_forward.1} parent=11 // pred_check_branch
          %173 = sbr.rel (%p171) target = $region24
        $region23: #{splitnn_forward.1} parent=11 // pred_region
          _
        $region24: #{splitnn_forward.1} parent=11 // pred_fallthru
          _
        // Predicated region
        $region25: #{splitnn_forward.1} parent=11 // pred_check
          %p174 = pneg %p124
        $region26: #{splitnn_forward.1} parent=11 // pred_check_branch
          %176 = sbr.rel (%p174) target = $region28
        $region27: #{splitnn_forward.1} parent=11 // pred_region
          _
        $region28: #{splitnn_forward.1} parent=11 // pred_fallthru
          _
      $region12: #{splitnn_forward.1} parent=5 // pred_fallthru
        _
      %p177 = scmp.lt.s32.totalorder %s14, 2
      // Predicated region
      $region29: #{splitnn_forward.1} parent=5 // pred_check
        %p178 = pneg %p177
      $region30: #{splitnn_forward.1} parent=5 // pred_check_branch
        %180 = sbr.rel (%p178) target = $region32
      $region31: #{splitnn_forward.1} parent=5 // pred_region
        // Predicated region
        $region33: #{splitnn_forward.1} parent=31 // pred_check
          %p181 = pneg %p34
        $region34: #{splitnn_forward.1} parent=31 // pred_check_branch
          %183 = sbr.rel (%p181) target = $region36
        $region35: #{splitnn_forward.1} parent=31 // pred_region
          %p184 = scmp.lt.s32.totalorder %s14, 1
          %s185 = scalar_select %p184, %s14, 1
          %s186 = smul.addr %s185, 8
          %s187 = scalar_lea.vmem %s0, %s186
        $region36: #{splitnn_forward.1} parent=31 // pred_fallthru
          _
      $region32: #{splitnn_forward.1} parent=5 // pred_fallthru
        _
      %p188 = scmp.le.s32.totalorder 1, %s14
      %p189 = scmp.lt.s32.totalorder %s14, 3
      %p190 = pnand %p188, %p189
      %p191 = pneg %p190
      // Predicated region
      $region37: #{splitnn_forward.1} parent=5 // pred_check
        _
      $region38: #{splitnn_forward.1} parent=5 // pred_check_branch
        %193 = sbr.rel (%p190) target = $region40
      $region39: #{splitnn_forward.1} parent=5 // pred_region
        %s194 = ssub.s32 %s14, 1
        %p195 = scmp.lt.s32.totalorder %s19, 1
        %s196 = scalar_select %p195, %s19, 1
        %s197 = smul.addr %s196, 8
        %s198 = scalar_lea.vmem %s0, %s197
        %p199 = pneg %p40
        %p200 = pneg %p37
        %p201 = pneg %p61
        %p202 = pneg %p58
        %p203 = pneg %p82
        %p204 = pneg %p79
        %p205 = pneg %p103
        %p206 = pneg %p100
        %p207 = pneg %p124
        %p208 = pneg %p121
        %p209 = pneg %p150
        %p210 = pneg %p147
        %s211 = sand.u32 %s137, 1
        %s212 = scalar_lea.sflag [#allocation3], %s211
        %s213 = sand.u32 %s137, 1
        %s214 = smul.addr %s213, 8
        %s215 = scalar_lea.vmem [#allocation2], %s214
        %p216 = scmp.lt.s32.totalorder %s19, 1
        %s217 = scalar_select %p216, %s19, 1
        %s218 = smul.addr %s217, 8
        %s219 = scalar_lea.vmem %s0, %s218
        %v220 = vld [vmem:[%s219] sm:$0xff]
        %v221 = vld [vmem:[%s1] sm:$0xff]
        %v222 = vld [vmem:[%s1 + $0x8] sm:$0xff]
        %v223 = vld [vmem:[%s1 + $0x10] sm:$0xff]
        %v224 = vld [vmem:[%s1 + $0x18] sm:$0xff]
        %v225 = vld [vmem:[%s1 + $0x20] sm:$0xff]
        %v226 = vld [vmem:[%s1 + $0x28] sm:$0xff]
        %v227 = vld [vmem:[%s1 + $0x30] sm:$0xff]
        %v228 = vld [vmem:[%s1 + $0x38] sm:$0xff]
        %v229 = vld [vmem:[%s2] sm:$0x1]
        %v231 = vlaneseq
        %v232 = vshrl.u32 %v231, 7
        %v233 = vsub.s32 0, %v232
        %v234 = vrot.slane %v229, %v233
        %vm236 = vcmask 523264
        %v238 = vsel %vm236, %v220, 0
        %240 = vmatprep.subr.mxu0 0.0
        %241 = vmatpush1.msra.mxu0 %v221
        %242 = vmatprep.subr.mxu0 0.0
        %243 = vmatpush1.msra.mxu0 %v222
        %244 = vmatprep.subr.mxu0 0.0
        %245 = vmatpush1.msra.mxu0 %v223
        %246 = vmatprep.subr.mxu0 0.0
        %247 = vmatpush1.msra.mxu0 %v224
        %248 = vmatprep.subr.mxu0 0.0
        %249 = vmatpush1.msra.mxu0 %v225
        %250 = vmatprep.subr.mxu0 0.0
        %251 = vmatpush1.msra.mxu0 %v226
        %252 = vmatprep.subr.mxu0 0.0
        %253 = vmatpush1.msra.mxu0 %v227
        %254 = vmatprep.subr.mxu0 0.0
        %255 = vmatpush1.msra.mxu0 %v228
        %256 = vmatprep.subr.mxu0 0.0
        %257 = vmatpush1.msra.mxu0 0.0
        %258 = vmatprep.subr.mxu0 0.0
        %259 = vmatpush1.msra.mxu0 0.0
        %260 = vmatprep.subr.mxu0 0.0
        %261 = vmatpush1.msra.mxu0 0.0
        %262 = vmatprep.subr.mxu0 0.0
        %263 = vmatpush1.msra.mxu0 0.0
        %264 = vmatprep.subr.mxu0 0.0
        %265 = vmatpush1.msra.mxu0 0.0
        %266 = vmatprep.subr.mxu0 0.0
        %267 = vmatpush1.msra.mxu0 0.0
        %268 = vmatprep.subr.mxu0 0.0
        %269 = vmatpush1.msra.mxu0 0.0
        %270 = vmatprep.subr.mxu0 0.0
        %271 = vmatpush1.msra.mxu0 0.0
        %272 = vmatprep.subr.mxu0 0.0
        %273 = vmatpush1.msra.mxu0 0.0
        %274 = vmatprep.subr.mxu0 0.0
        %275 = vmatpush1.msra.mxu0 0.0
        %276 = vmatprep.subr.mxu0 0.0
        %277 = vmatpush1.msra.mxu0 0.0
        %278 = vmatprep.subr.mxu0 0.0
        %279 = vmatpush1.msra.mxu0 0.0
        %280 = vmatprep.subr.mxu0 0.0
        %281 = vmatpush1.msra.mxu0 0.0
        %282 = vmatprep.subr.mxu0 0.0
        %283 = vmatpush1.msra.mxu0 0.0
        %284 = vmatprep.subr.mxu0 0.0
        %285 = vmatpush1.msra.mxu0 0.0
        %286 = vmatprep.subr.mxu0 0.0
        %287 = vmatpush1.msra.mxu0 0.0
        %288 = vmatprep.subr.mxu0 0.0
        %289 = vmatpush1.msra.mxu0 0.0
        %290 = vmatprep.subr.mxu0 0.0
        %291 = vmatpush1.msra.mxu0 0.0
        %292 = vmatprep.subr.mxu0 0.0
        %293 = vmatpush1.msra.mxu0 0.0
        %294 = vmatprep.subr.mxu0 0.0
        %295 = vmatpush1.msra.mxu0 0.0
        %296 = vmatprep.subr.mxu0 0.0
        %297 = vmatpush1.msra.mxu0 0.0
        %298 = vmatprep.subr.mxu0 0.0
        %299 = vmatpush1.msra.mxu0 0.0
        %300 = vmatprep.subr.mxu0 0.0
        %301 = vmatpush1.msra.mxu0 0.0
        %302 = vmatprep.subr.mxu0 0.0
        %303 = vmatpush1.msra.mxu0 0.0
        %304 = vmatprep.mubr.f32.mxu0 0.0
        %305 = vmatmul.mubr.f32.gmra.mrb[0].mxu0 %v238
        %v306 = vpop.f32.mrb[0].mxu0
        %v307 = vadd.f32 %v234, %v306
        %v308 = vpop.f32.mrb[0].mxu0
        %309 = vdwg.mxu0
        %v310 = vmax.f32 %v307, 0.0
        %v311 = vld [vmem:[%s3] sm:$0xff]
        %v312 = vld [vmem:[%s3 + $0x8] sm:$0xff]
        %v313 = vld [vmem:[%s3 + $0x10] sm:$0xff]
        %v314 = vld [vmem:[%s3 + $0x18] sm:$0xff]
        %v315 = vld [vmem:[%s3 + $0x20] sm:$0xff]
        %v316 = vld [vmem:[%s3 + $0x28] sm:$0xff]
        %v317 = vld [vmem:[%s3 + $0x30] sm:$0xff]
        %v318 = vld [vmem:[%s3 + $0x38] sm:$0xff]
        %v319 = vld [vmem:[%s3 + $0x40] sm:$0xff]
        %v320 = vld [vmem:[%s3 + $0x48] sm:$0xff]
        %v321 = vld [vmem:[%s3 + $0x50] sm:$0xff]
        %v322 = vld [vmem:[%s3 + $0x58] sm:$0xff]
        %v323 = vld [vmem:[%s3 + $0x60] sm:$0xff]
        %v324 = vld [vmem:[%s3 + $0x68] sm:$0xff]
        %v325 = vld [vmem:[%s3 + $0x70] sm:$0xff]
        %v326 = vld [vmem:[%s3 + $0x78] sm:$0xff]
        %v327 = vld [vmem:[%s4] sm:$0x1]
        %v329 = vlaneseq
        %v330 = vshrl.u32 %v329, 7
        %v331 = vsub.s32 0, %v330
        %v332 = vrot.slane %v327, %v331
        %334 = vmatprep.subr.mxu0 0.0
        %335 = vmatpush1.msra.mxu0 %v311
        %336 = vmatprep.subr.mxu0 0.0
        %337 = vmatpush1.msra.mxu0 %v312
        %338 = vmatprep.subr.mxu0 0.0
        %339 = vmatpush1.msra.mxu0 %v313
        %340 = vmatprep.subr.mxu0 0.0
        %341 = vmatpush1.msra.mxu0 %v314
        %342 = vmatprep.subr.mxu0 0.0
        %343 = vmatpush1.msra.mxu0 %v315
        %344 = vmatprep.subr.mxu0 0.0
        %345 = vmatpush1.msra.mxu0 %v316
        %346 = vmatprep.subr.mxu0 0.0
        %347 = vmatpush1.msra.mxu0 %v317
        %348 = vmatprep.subr.mxu0 0.0
        %349 = vmatpush1.msra.mxu0 %v318
        %350 = vmatprep.subr.mxu0 0.0
        %351 = vmatpush1.msra.mxu0 %v319
        %352 = vmatprep.subr.mxu0 0.0
        %353 = vmatpush1.msra.mxu0 %v320
        %354 = vmatprep.subr.mxu0 0.0
        %355 = vmatpush1.msra.mxu0 %v321
        %356 = vmatprep.subr.mxu0 0.0
        %357 = vmatpush1.msra.mxu0 %v322
        %358 = vmatprep.subr.mxu0 0.0
        %359 = vmatpush1.msra.mxu0 %v323
        %360 = vmatprep.subr.mxu0 0.0
        %361 = vmatpush1.msra.mxu0 %v324
        %362 = vmatprep.subr.mxu0 0.0
        %363 = vmatpush1.msra.mxu0 %v325
        %364 = vmatprep.subr.mxu0 0.0
        %365 = vmatpush1.msra.mxu0 %v326
        %366 = vmatprep.subr.mxu0 0.0
        %367 = vmatpush1.msra.mxu0 0.0
        %368 = vmatprep.subr.mxu0 0.0
        %369 = vmatpush1.msra.mxu0 0.0
        %370 = vmatprep.subr.mxu0 0.0
        %371 = vmatpush1.msra.mxu0 0.0
        %372 = vmatprep.subr.mxu0 0.0
        %373 = vmatpush1.msra.mxu0 0.0
        %374 = vmatprep.subr.mxu0 0.0
        %375 = vmatpush1.msra.mxu0 0.0
        %376 = vmatprep.subr.mxu0 0.0
        %377 = vmatpush1.msra.mxu0 0.0
        %378 = vmatprep.subr.mxu0 0.0
        %379 = vmatpush1.msra.mxu0 0.0
        %380 = vmatprep.subr.mxu0 0.0
        %381 = vmatpush1.msra.mxu0 0.0
        %382 = vmatprep.subr.mxu0 0.0
        %383 = vmatpush1.msra.mxu0 0.0
        %384 = vmatprep.subr.mxu0 0.0
        %385 = vmatpush1.msra.mxu0 0.0
        %386 = vmatprep.subr.mxu0 0.0
        %387 = vmatpush1.msra.mxu0 0.0
        %388 = vmatprep.subr.mxu0 0.0
        %389 = vmatpush1.msra.mxu0 0.0
        %390 = vmatprep.subr.mxu0 0.0
        %391 = vmatpush1.msra.mxu0 0.0
        %392 = vmatprep.subr.mxu0 0.0
        %393 = vmatpush1.msra.mxu0 0.0
        %394 = vmatprep.subr.mxu0 0.0
        %395 = vmatpush1.msra.mxu0 0.0
        %396 = vmatprep.subr.mxu0 0.0
        %397 = vmatpush1.msra.mxu0 0.0
        %398 = vmatprep.mubr.f32.mxu0 0.0
        %399 = vmatmul.mubr.f32.gmra.mrb[0].mxu0 %v310
        %v400 = vpop.f32.mrb[0].mxu0
        %v401 = vadd.f32 %v332, %v400
        %v402 = vpop.f32.mrb[0].mxu0
        %403 = vdwg.mxu0
        %vm404 = vcmask 130048
        %v405 = vsel %vm404, %v401, -inf
        %406 = vmax.xlane.f32.xlu0 %v405
        %v407 = vpop.xlane.xlu0 %406
        %v408 = vsub.f32 %v401, %v407
        %v409 = vmul.f32 %v408, 1.442695
        %v410 = vpow.pop %v409
        %v411 = vsel %vm404, %v410, 0.0
        %412 = vadd.xlane.f32.xlu0 %v411
        %v413 = vpop.xlane.xlu0 %412
        %v414 = vlog2.pop %v413
        %v415 = vmul.f32 %v414, 0.6931472
        %v416 = vsub.f32 %v408, %v415
        %417 = vst.msk [vmem:[%s215] sm:$0xff] %vm404, %v416
        %s418 = sand.u32 %s137, 1
        %s419 = scalar_lea.sflag [#allocation3], %s418
        %s420 = sand.u32 %s137, 1
        %s421 = smul.addr %s420, 8
        %s422 = scalar_lea.vmem [#allocation2], %s421
        // Predicated region
        $region41: #{splitnn_forward.1} parent=39 // pred_check
          %p423 = pneg %p147
        $region42: #{splitnn_forward.1} parent=39 // pred_check_branch
          %425 = sbr.rel (%p423) target = $region44
        $region43: #{splitnn_forward.1} parent=39 // pred_region
          %s427 = ssub.s32 128, 128
          %428 = vsyncadd %s419, %s427
          %s429 = smul.addr %s19, 128
          %s430 = scalar_lea.hbm %s5, %s429
          %s432 = sshll.u32 %s422, 4
          %s433 = int_to_ptr.vmem [resolvable:$true] %s432
          %435 = dma.vmem_to_hbm [thread:$0]  %s433, 128, %s430, %s419
        $region44: #{splitnn_forward.1} parent=39 // pred_fallthru
          _
      $region40: #{splitnn_forward.1} parent=5 // pred_fallthru
        _
      %p436 = scmp.le.s32.totalorder 2, %s14
      // Predicated region
      $region45: #{splitnn_forward.1} parent=5 // pred_check
        %p437 = pneg %p436
      $region46: #{splitnn_forward.1} parent=5 // pred_check_branch
        %439 = sbr.rel (%p437) target = $region48
      $region47: #{splitnn_forward.1} parent=5 // pred_region
        %s440 = ssub.s32 %s14, 2
        // Predicated region
        $region49: #{splitnn_forward.1} parent=47 // pred_check
          %p441 = pneg %p153
        $region50: #{splitnn_forward.1} parent=47 // pred_check_branch
          %443 = sbr.rel (%p441) target = $region52
        $region51: #{splitnn_forward.1} parent=47 // pred_region
          %s444 = sand.u32 %s138, 1
          %s445 = scalar_lea.sflag [#allocation3], %s444
          %s446 = sand.u32 %s138, 1
          %s447 = smul.addr %s446, 8
          %s448 = scalar_lea.vmem [#allocation2], %s447
          %449 = dma.done %s445, 128
        $region52: #{splitnn_forward.1} parent=47 // pred_fallthru
          _
      $region48: #{splitnn_forward.1} parent=5 // pred_fallthru
        _
    $region6: #{splitnn_forward.1} parent=1 // loop_footer
      %s18 = sadd.s32 1, %s14
    $region7: #{splitnn_forward.1} parent=1 // loop_footer_branch
      %13 = sbr.rel target = $region3
    $region8: #{splitnn_forward.1} parent=1 // loop_exit
      _
    %450 = vsyncpa [#allocation3], 1
    %s451 = scalar_lea.sflag [#allocation3], 1
    %452 = vsyncpa %s451, 1

</llo_original>
